<compile_context>
chip_gen: v6e
topology: v6e:2x2x1
jax: 0.10.0
libtpu: 0.0.40
codegen_flags: <defaults>
</compile_context>

<pallas_src>
import math

import jax
import jax.numpy as jnp
from jax.experimental import pallas as pl
from jax.experimental.pallas import tpu as pltpu

LANE = 128      # vreg lane width (last dim)
SUBLANE = 8     # f32 sublane tile (second-to-last dim)


def _round_up(x, m):
    return (x + m - 1) // m * m


def _pad2(a, rows, cols):
    return jnp.pad(a, ((0, rows - a.shape[0]), (0, cols - a.shape[1])))


def _nbytes(a):
    return int(a.size) * a.dtype.itemsize


# ----------------------------- Pallas kernels -------------------------------
def _prefixnet_kernel_x(x_ref, emb_ref, w1_ref, b1_ref, w2_ref, b2_ref, o_ref):
    # x + emb in f32 (VPU), then cast to the weight dtype to feed the MXU.
    h = (x_ref[...] + emb_ref[...]).astype(w1_ref.dtype)            # [R, E]
    a1 = jnp.dot(h, w1_ref[...], preferred_element_type=jnp.float32)
    a1 = a1 + b1_ref[...]                                           # [R, H] f32
    t = jnp.tanh(a1).astype(w2_ref.dtype)                           # EUP
    a2 = jnp.dot(t, w2_ref[...], preferred_element_type=jnp.float32)
    a2 = a2 + b2_ref[...]                                           # [R, E] f32
    o_ref[...] = a2.astype(o_ref.dtype)


def _prefixnet_kernel_nox(emb_ref, w1_ref, b1_ref, w2_ref, b2_ref, o_ref):
    # x=None branch: no zero tensor materialized, no add, one less DMA.
    h = emb_ref[...].astype(w1_ref.dtype)
    a1 = jnp.dot(h, w1_ref[...], preferred_element_type=jnp.float32)
    a1 = a1 + b1_ref[...]
    t = jnp.tanh(a1).astype(w2_ref.dtype)
    a2 = jnp.dot(t, w2_ref[...], preferred_element_type=jnp.float32)
    a2 = a2 + b2_ref[...]
    o_ref[...] = a2.astype(o_ref.dtype)


# ------------------------------ tiling choice --------------------------------
def _prefixes_per_tile(batch, l_pad, e_pad, h_pad, w_itemsize):
    """Pack several prefixes per grid step: big lane-dense tiles amortize the
    per-step overhead, capped so resident weights + double-buffered x/out
    tiles stay well inside the default scoped-VMEM limit."""
    weight_bytes = (e_pad * h_pad + h_pad * e_pad) * w_itemsize \
        + (h_pad + e_pad) * 4
    budget = 24 * 1024 * 1024 - weight_bytes           # conservative VMEM cap
    per_prefix = l_pad * e_pad * 4                      # one f32 row tile
    # 2x double-buffered x + 2x double-buffered out + emb tile ≈ 5 tiles
    max_by_vmem = max(1, budget // (5 * per_prefix))
    target_rows = 512                                   # ~85% HBM roofline
    n_per = min(batch, max(1, target_rows // l_pad), max_by_vmem)
    return int(n_per)


# ------------------------------- wrapper ------------------------------------
def prefixnet_forward(x, params):
    """PrefixNet forward.

    x: None, [length, emb_size], or [B, length, emb_size].
    params: dict produced by make_params (padded, pre-transposed weights).
    Returns the same leading shape as x (or [length, emb_size] when x is None).
    """
    emb_p = params["emb"]            # [L_pad, E_pad] f32
    w1_t = params["w1_t"]            # [E_pad, H_pad] (f32 or bf16)
    b1 = params["b1"]                # [1, H_pad]     f32
    w2_t = params["w2_t"]            # [H_pad, E_pad] (f32 or bf16)
    b2 = params["b2"]                # [1, E_pad]     f32
    length, emb_size = params["length"], params["emb_size"]
    l_pad, e_pad = emb_p.shape
    h_pad = w1_t.shape[1]

    resident = lambda shape: pl.BlockSpec(shape, lambda i: (0, 0))
    weight_specs = [
        resident((e_pad, h_pad)),    # W1^T, VMEM-resident across grid steps
        resident((1, h_pad)),        # b1
        resident((h_pad, e_pad)),    # W2^T
        resident((1, e_pad)),        # b2
    ]
    weight_bytes = _nbytes(w1_t) + _nbytes(b1) + _nbytes(w2_t) + _nbytes(b2)
    flops_per_prefix = 2 * l_pad * (e_pad * h_pad + h_pad * e_pad)

    if x is None:
        cost = pl.CostEstimate(
            flops=flops_per_prefix,
            transcendentals=l_pad * h_pad,
            bytes_accessed=_nbytes(emb_p) + weight_bytes + l_pad * e_pad * 4,
        )
        out = pl.pallas_call(
            _prefixnet_kernel_nox,
            out_shape=jax.ShapeDtypeStruct((l_pad, e_pad), emb_p.dtype),
            grid=(1,),
            in_specs=[resident((l_pad, e_pad))] + weight_specs,
            out_specs=resident((l_pad, e_pad)),
            compiler_params=pltpu.CompilerParams(
                dimension_semantics=("parallel",)),
            cost_estimate=cost,
        )(emb_p, w1_t, b1, w2_t, b2)
        return out[:length, :emb_size]

    squeeze_batch = x.ndim == 2
    if squeeze_batch:
        x = x[None]
    batch = x.shape[0]
    assert x.shape[1:] == (length, emb_size)

    # How many prefixes per grid step; pad batch up to a multiple of it.
    n_per = _prefixes_per_tile(batch, l_pad, e_pad, h_pad, w1_t.dtype.itemsize)
    padded_batch = _round_up(batch, n_per)
    tile_rows = n_per * l_pad
    n_steps = padded_batch // n_per

    # Pad to lane/sublane-dense tiles and flatten batch into row tiles.
    x_p = jnp.pad(
        x.astype(emb_p.dtype),
        ((0, padded_batch - batch), (0, l_pad - length), (0, e_pad - emb_size)),
    ).reshape(padded_batch * l_pad, e_pad)

    # Pre-tile the prefix embedding so each grid step does a plain row-add
    # (no in-kernel broadcast/tile on the VPU, one resident VMEM block).
    emb_tiled = jnp.tile(emb_p, (n_per, 1))              # [tile_rows, E_pad]

    cost = pl.CostEstimate(
        flops=padded_batch * flops_per_prefix,
        transcendentals=padded_batch * l_pad * h_pad,
        bytes_accessed=(_nbytes(x_p) + _nbytes(emb_tiled) + weight_bytes
                        + padded_batch * l_pad * e_pad * 4),
    )

    out = pl.pallas_call(
        _prefixnet_kernel_x,
        out_shape=jax.ShapeDtypeStruct((padded_batch * l_pad, e_pad),
                                       emb_p.dtype),
        grid=(n_steps,),
        in_specs=[
            pl.BlockSpec((tile_rows, e_pad), lambda i: (i, 0)),   # x row tile
            resident((tile_rows, e_pad)),                         # tiled emb
        ] + weight_specs,
        out_specs=pl.BlockSpec((tile_rows, e_pad), lambda i: (i, 0)),
        compiler_params=pltpu.CompilerParams(
            dimension_semantics=("parallel",)),                   # v7x: 2 TCs
        cost_estimate=cost,
    )(x_p, emb_tiled, w1_t, b1, w2_t, b2)

    out = out.reshape(padded_batch, l_pad, e_pad)[:batch, :length, :emb_size]
    return out[0] if squeeze_batch else out


# -------------------------- parameter construction --------------------------
def xavier_uniform(key, shape):
    # matches torch.nn.init.xavier_uniform_ for 2-D [fan_out, fan_in] weights
    fan_out, fan_in = shape
    limit = math.sqrt(6.0 / (fan_in + fan_out))
    return jax.random.uniform(key, shape, jnp.float32, -limit, limit)


def linear_bias(key, fan_in, fan_out):
    # matches torch.nn.Linear default bias init: U(-1/sqrt(fan_in), 1/sqrt(fan_in))
    bound = 1.0 / math.sqrt(fan_in)
    return jax.random.uniform(key, (1, fan_out), jnp.float32, -bound, bound)


def make_params(key, length, emb_size, hidden_size, weight_dtype=jnp.float32):
    """Builds PrefixNet parameters: padded + pre-transposed for the kernel,
    plus unpadded f32 copies under 'ref' for reference checking."""
    l_pad = _round_up(length, SUBLANE)
    e_pad = _round_up(emb_size, LANE)
    h_pad = _round_up(hidden_size, LANE)

    k_emb, k_w1, k_b1, k_w2, k_b2 = jax.random.split(key, 5)
    emb = xavier_uniform(k_emb, (length, emb_size))
    w1 = xavier_uniform(k_w1, (hidden_size, emb_size))   # torch layout [out, in]
    b1 = linear_bias(k_b1, emb_size, hidden_size)
    w2 = xavier_uniform(k_w2, (emb_size, hidden_size))
    b2 = linear_bias(k_b2, hidden_size, emb_size)

    return dict(
        # padded kernel-side parameters (weights optionally bf16, rest f32)
        emb=_pad2(emb, l_pad, e_pad),
        w1_t=_pad2(w1.T, e_pad, h_pad).astype(weight_dtype),
        b1=_pad2(b1, 1, h_pad),
        w2_t=_pad2(w2.T, h_pad, e_pad).astype(weight_dtype),
        b2=_pad2(b2, 1, e_pad),
        length=length, emb_size=emb_size, hidden_size=hidden_size,
        # unpadded f32 copies for the pure-JAX reference
        ref=dict(emb=emb, w1_t=w1.T, b1=b1, w2_t=w2.T, b2=b2),
    )


def _reference(x, params):
    r = params["ref"]
    h = r["emb"] if x is None else x + r["emb"]
    return jnp.tanh(h @ r["w1_t"] + r["b1"]) @ r["w2_t"] + r["b2"]


# ---------------------------------- main -------------------------------------
if __name__ == "__main__":
    length, emb_size, hidden_size = 8, 32, 64

    key = jax.random.PRNGKey(0)
    k_params, k_x, k_xb = jax.random.split(key, 3)

    # --- f32 weights, single prefix with x: strict correctness check ---------
    params_f32 = make_params(k_params, length, emb_size, hidden_size,
                             weight_dtype=jnp.float32)
    x = jax.random.normal(k_x, (length, emb_size), jnp.float32)

    fwd_f32 = jax.jit(lambda xi: prefixnet_forward(xi, params_f32))
    out = jax.block_until_ready(fwd_f32(x))
    ref = _reference(x, params_f32)
    assert out.shape == (length, emb_size)
    assert jnp.allclose(out, ref, atol=1e-5, rtol=1e-5)

    # --- x = None branch: dedicated kernel, no zero tensor, one less DMA -----
    fwd_none = jax.jit(lambda: prefixnet_forward(None, params_f32))
    out_none = jax.block_until_ready(fwd_none())
    ref_none = _reference(None, params_f32)
    assert out_none.shape == (length, emb_size)
    assert jnp.allclose(out_none, ref_none, atol=1e-5, rtol=1e-5)

    # --- bf16 weights, batched prefixes (packed row tiles, parallel grid) ----
    params_bf16 = make_params(k_params, length, emb_size, hidden_size,
                              weight_dtype=jnp.bfloat16)
    xb = jax.random.normal(k_xb, (4, length, emb_size), jnp.float32)
    fwd_bf16 = jax.jit(lambda xi: prefixnet_forward(xi, params_bf16))
    out_b = jax.block_until_ready(fwd_bf16(xb))
    ref_b = jax.vmap(lambda xi: _reference(xi, params_bf16))(xb)
    assert out_b.shape == (4, length, emb_size)
    assert jnp.allclose(out_b, ref_b, atol=5e-2, rtol=5e-2)  # bf16 weight path

    print("KERNEL_OK")
</pallas_src>

<mosaic_0001>
module attributes {stable_mosaic.version = 11 : i64} {
  func.func @_prefixnet_kernel_x(%arg0: i32, %arg1: memref<8x128xf32, #tpu.memory_space<vmem>>, %arg2: memref<8x128xf32, #tpu.memory_space<vmem>>, %arg3: memref<128x128xf32, #tpu.memory_space<vmem>>, %arg4: memref<1x128xf32, #tpu.memory_space<vmem>>, %arg5: memref<128x128xf32, #tpu.memory_space<vmem>>, %arg6: memref<1x128xf32, #tpu.memory_space<vmem>>, %arg7: memref<8x128xf32, #tpu.memory_space<vmem>>) attributes {dimension_semantics = [#tpu.dimension_semantics<parallel>], iteration_bounds = array<i64: 1>, scalar_prefetch = 0 : i64, scratch_operands = 0 : i64, tpu.core_type = #tpu.core_type<tc>, window_params = [{transform_indices = @transform_0, window_bounds = array<i64: 8, 128>}, {pipeline_mode = #tpu.pipeline_mode<synchronous>, transform_indices = @transform_1, window_bounds = array<i64: 8, 128>}, {pipeline_mode = #tpu.pipeline_mode<synchronous>, transform_indices = @transform_2, window_bounds = array<i64: 128, 128>}, {pipeline_mode = #tpu.pipeline_mode<synchronous>, transform_indices = @transform_3, window_bounds = array<i64: 1, 128>}, {pipeline_mode = #tpu.pipeline_mode<synchronous>, transform_indices = @transform_4, window_bounds = array<i64: 128, 128>}, {pipeline_mode = #tpu.pipeline_mode<synchronous>, transform_indices = @transform_5, window_bounds = array<i64: 1, 128>}, {transform_indices = @transform_6, window_bounds = array<i64: 8, 128>}]} {
    %c0 = arith.constant 0 : index
    %c0_0 = arith.constant 0 : index
    %0 = vector.load %arg1[%c0, %c0_0] : memref<8x128xf32, #tpu.memory_space<vmem>>, vector<8x128xf32>
    %c0_1 = arith.constant 0 : index
    %c0_2 = arith.constant 0 : index
    %1 = vector.load %arg2[%c0_1, %c0_2] : memref<8x128xf32, #tpu.memory_space<vmem>>, vector<8x128xf32>
    %2 = arith.addf %0, %1 : vector<8x128xf32>
    %c0_3 = arith.constant 0 : index
    %c0_4 = arith.constant 0 : index
    %3 = vector.load %arg3[%c0_3, %c0_4] : memref<128x128xf32, #tpu.memory_space<vmem>>, vector<128x128xf32>
    %cst = arith.constant dense<0.000000e+00> : vector<8x128xf32>
    %4 = tpu.matmul %2, %3, %cst {dimension_numbers = #tpu.dot_dimension_numbers<[1], [0], [0], [1], [0, 0, 1, 1], [], []>} : vector<8x128xf32>, vector<128x128xf32>, vector<8x128xf32> -> vector<8x128xf32>
    %c0_5 = arith.constant 0 : index
    %c0_6 = arith.constant 0 : index
    %5 = vector.load %arg4[%c0_5, %c0_6] : memref<1x128xf32, #tpu.memory_space<vmem>>, vector<1x128xf32>
    %6 = vector.broadcast %5 : vector<1x128xf32> to vector<8x128xf32>
    %7 = arith.addf %4, %6 : vector<8x128xf32>
    %8 = math.tanh %7 : vector<8x128xf32>
    %c0_7 = arith.constant 0 : index
    %c0_8 = arith.constant 0 : index
    %9 = vector.load %arg5[%c0_7, %c0_8] : memref<128x128xf32, #tpu.memory_space<vmem>>, vector<128x128xf32>
    %cst_9 = arith.constant dense<0.000000e+00> : vector<8x128xf32>
    %10 = tpu.matmul %8, %9, %cst_9 {dimension_numbers = #tpu.dot_dimension_numbers<[1], [0], [0], [1], [0, 0, 1, 1], [], []>} : vector<8x128xf32>, vector<128x128xf32>, vector<8x128xf32> -> vector<8x128xf32>
    %c0_10 = arith.constant 0 : index
    %c0_11 = arith.constant 0 : index
    %11 = vector.load %arg6[%c0_10, %c0_11] : memref<1x128xf32, #tpu.memory_space<vmem>>, vector<1x128xf32>
    %12 = vector.broadcast %11 : vector<1x128xf32> to vector<8x128xf32>
    %13 = arith.addf %10, %12 : vector<8x128xf32>
    %c0_12 = arith.constant 0 : index
    %c0_13 = arith.constant 0 : index
    %14 = vector.load %arg7[%c0_12, %c0_13] : memref<8x128xf32, #tpu.memory_space<vmem>>, vector<8x128xf32>
    tpu.vector_store %arg7[%c0_12, %c0_13], %13 {strides = array<i32>} : memref<8x128xf32, #tpu.memory_space<vmem>>, vector<8x128xf32>,
    return
  }
  func.func @transform_0(%arg0: i32) -> (i32, i32) {
    %c0_i32 = arith.constant 0 : i32
    %c0_i32_0 = arith.constant 0 : i32
    return %arg0, %c0_i32 : i32, i32
  }
  func.func @transform_1(%arg0: i32) -> (i32, i32) {
    %c0_i32 = arith.constant 0 : i32
    %c0_i32_0 = arith.constant 0 : i32
    %c0_i32_1 = arith.constant 0 : i32
    return %c0_i32, %c0_i32_0 : i32, i32
  }
  func.func @transform_2(%arg0: i32) -> (i32, i32) {
    %c0_i32 = arith.constant 0 : i32
    %c0_i32_0 = arith.constant 0 : i32
    %c0_i32_1 = arith.constant 0 : i32
    return %c0_i32, %c0_i32_0 : i32, i32
  }
  func.func @transform_3(%arg0: i32) -> (i32, i32) {
    %c0_i32 = arith.constant 0 : i32
    %c0_i32_0 = arith.constant 0 : i32
    %c0_i32_1 = arith.constant 0 : i32
    return %c0_i32, %c0_i32_0 : i32, i32
  }
  func.func @transform_4(%arg0: i32) -> (i32, i32) {
    %c0_i32 = arith.constant 0 : i32
    %c0_i32_0 = arith.constant 0 : i32
    %c0_i32_1 = arith.constant 0 : i32
    return %c0_i32, %c0_i32_0 : i32, i32
  }
  func.func @transform_5(%arg0: i32) -> (i32, i32) {
    %c0_i32 = arith.constant 0 : i32
    %c0_i32_0 = arith.constant 0 : i32
    %c0_i32_1 = arith.constant 0 : i32
    return %c0_i32, %c0_i32_0 : i32, i32
  }
  func.func @transform_6(%arg0: i32) -> (i32, i32) {
    %c0_i32 = arith.constant 0 : i32
    %c0_i32_0 = arith.constant 0 : i32
    return %arg0, %c0_i32 : i32, i32
  }
}

</mosaic_0001>

<llo_original>
// kernel: _lambda_.1
$region0: #{_lambda_.1}
  #allocation0 [shape = 'u32[]', space=smem, size = 0x4, offset = 0x4, fixed_abs, tag = 'smem constant byte address 0x4 - core index']
  #allocation1 [shape = 'u32[144,128]{1,0:T(1,128)}', space=vmem, size = 0x12000, scoped, tag = 'internal scratch']
  %s0 = inlined_call_operand.vmem [shape: f32[8,128], index: 0, kind: input, shape index: {}]
  %s1 = inlined_call_operand.vmem [shape: f32[8,128], index: 1, kind: input, shape index: {}]
  %s2 = inlined_call_operand.hbm [shape: f32[128,128], index: 2, kind: input, shape index: {}]
  %s3 = inlined_call_operand.vmem [shape: f32[1,128], index: 3, kind: input, shape index: {}]
  %s4 = inlined_call_operand.hbm [shape: f32[128,128], index: 4, kind: input, shape index: {}]
  %s5 = inlined_call_operand.vmem [shape: f32[1,128], index: 5, kind: input, shape index: {}]
  %s6 = inlined_call_operand.vmem [shape: f32[8,128], index: 6, kind: output, shape index: {}]
  %s7 = sld [smem:[#allocation0]]
  $region42: #{_lambda_.1} parent=0
    _
  %s9 = ssub.s32 1, %s7
  %s10 = scalar_select 0, %s9, %s7
  $region1: #{_lambda_.1} parent=0
    #allocation2 [shape = 'u8[65536]{0}', space=vmem, size = 0x10000, scoped, tag = 'input window, operand 2, single buffered']
    #allocation3 [shape = 's32[1]{0}', space=sflag, size = 0x4, scoped, tag = 'scoped memory for _lambda_.1']
    #allocation4 [shape = 'u8[65536]{0}', space=vmem, size = 0x10000, scoped, tag = 'input window, operand 4, single buffered']
    #allocation5 [shape = 's32[1]{0}', space=sflag, size = 0x4, scoped, tag = 'scoped memory for _lambda_.1']
    %11 = vsyncpa [#allocation3], 0
    %12 = vsyncpa [#allocation5], 0
    // Predicated region
    $region2: #{_lambda_.1} parent=1 // pred_check
      _
    $region3: #{_lambda_.1} parent=1 // pred_check_branch
      %14 = sbr.rel (0) target = $region5
    $region4: #{_lambda_.1} parent=1 // pred_region
      _
    $region5: #{_lambda_.1} parent=1 // pred_fallthru
      _
    // Predicated region
    $region6: #{_lambda_.1} parent=1 // pred_check
      _
    $region7: #{_lambda_.1} parent=1 // pred_check_branch
      %16 = sbr.rel (0) target = $region9
    $region8: #{_lambda_.1} parent=1 // pred_region
      _
    $region9: #{_lambda_.1} parent=1 // pred_fallthru
      _
    // Predicated region
    $region10: #{_lambda_.1} parent=1 // pred_check
      _
    $region11: #{_lambda_.1} parent=1 // pred_check_branch
      %18 = sbr.rel (0) target = $region13
    $region12: #{_lambda_.1} parent=1 // pred_region
      %s20 = ssub.s32 2048, 2048
      %21 = vsyncadd [#allocation3], %s20
      %s22 = sshll.u32 [#allocation2], 4
      %s23 = int_to_ptr.vmem [resolvable:$true] %s22
      %28 = dma.hbm_to_vmem [thread:$0]  %s2, 2048, %s23, [#allocation3], 128, 128, 8
    $region13: #{_lambda_.1} parent=1 // pred_fallthru
      _
    // Predicated region
    $region14: #{_lambda_.1} parent=1 // pred_check
      _
    $region15: #{_lambda_.1} parent=1 // pred_check_branch
      %30 = sbr.rel (0) target = $region17
    $region16: #{_lambda_.1} parent=1 // pred_region
      _
    $region17: #{_lambda_.1} parent=1 // pred_fallthru
      _
    // Predicated region
    $region18: #{_lambda_.1} parent=1 // pred_check
      _
    $region19: #{_lambda_.1} parent=1 // pred_check_branch
      %32 = sbr.rel (0) target = $region21
    $region20: #{_lambda_.1} parent=1 // pred_region
      %s34 = ssub.s32 2048, 2048
      %35 = vsyncadd [#allocation5], %s34
      %s36 = sshll.u32 [#allocation4], 4
      %s37 = int_to_ptr.vmem [resolvable:$true] %s36
      %42 = dma.hbm_to_vmem [thread:$0]  %s4, 2048, %s37, [#allocation5], 128, 128, 8
    $region21: #{_lambda_.1} parent=1 // pred_fallthru
      _
    // Predicated region
    $region22: #{_lambda_.1} parent=1 // pred_check
      _
    $region23: #{_lambda_.1} parent=1 // pred_check_branch
      %44 = sbr.rel (0) target = $region25
    $region24: #{_lambda_.1} parent=1 // pred_region
      _
    $region25: #{_lambda_.1} parent=1 // pred_fallthru
      _
    // Predicated region
    $region26: #{_lambda_.1} parent=1 // pred_check
      _
    $region27: #{_lambda_.1} parent=1 // pred_check_branch
      %46 = sbr.rel (0) target = $region29
    $region28: #{_lambda_.1} parent=1 // pred_region
      %47 = dma.done [#allocation3], 2048
    $region29: #{_lambda_.1} parent=1 // pred_fallthru
      _
    // Predicated region
    $region30: #{_lambda_.1} parent=1 // pred_check
      _
    $region31: #{_lambda_.1} parent=1 // pred_check_branch
      %49 = sbr.rel (0) target = $region33
    $region32: #{_lambda_.1} parent=1 // pred_region
      %50 = dma.done [#allocation5], 2048
    $region33: #{_lambda_.1} parent=1 // pred_fallthru
      _
    %v51 = vld [vmem:[%s0] sm:$0xff]
    %v52 = vld [vmem:[%s1] sm:$0xff]
    %v53 = vadd.f32 %v51, %v52
    %v54 = vld [vmem:[#allocation2] sm:$0xff]
    %v55 = vld [vmem:[#allocation2 + $0x8] sm:$0xff]
    %v56 = vld [vmem:[#allocation2 + $0x10] sm:$0xff]
    %v57 = vld [vmem:[#allocation2 + $0x18] sm:$0xff]
    %v58 = vld [vmem:[#allocation2 + $0x20] sm:$0xff]
    %v59 = vld [vmem:[#allocation2 + $0x28] sm:$0xff]
    %v60 = vld [vmem:[#allocation2 + $0x30] sm:$0xff]
    %v61 = vld [vmem:[#allocation2 + $0x38] sm:$0xff]
    %v62 = vld [vmem:[#allocation2 + $0x40] sm:$0xff]
    %v63 = vld [vmem:[#allocation2 + $0x48] sm:$0xff]
    %v64 = vld [vmem:[#allocation2 + $0x50] sm:$0xff]
    %v65 = vld [vmem:[#allocation2 + $0x58] sm:$0xff]
    %v66 = vld [vmem:[#allocation2 + $0x60] sm:$0xff]
    %v67 = vld [vmem:[#allocation2 + $0x68] sm:$0xff]
    %v68 = vld [vmem:[#allocation2 + $0x70] sm:$0xff]
    %v69 = vld [vmem:[#allocation2 + $0x78] sm:$0xff]
    %v70 = vld [vmem:[%s3] sm:$0x1]
    %v72 = vlaneseq
    %v73 = vshrl.u32 %v72, 7
    %v74 = vsub.s32 0, %v73
    %v75 = vrot.slane %v70, %v74
    %77 = vmatprep.subr.mxu0 0.0
    %78 = vmatpush1.msra.mxu0 %v69
    %79 = vmatprep.subr.mxu0 0.0
    %80 = vmatpush1.msra.mxu0 %v68
    %81 = vmatprep.subr.mxu0 0.0
    %82 = vmatpush1.msra.mxu0 %v67
    %83 = vmatprep.subr.mxu0 0.0
    %84 = vmatpush1.msra.mxu0 %v66
    %85 = vmatprep.subr.mxu0 0.0
    %86 = vmatpush1.msra.mxu0 %v65
    %87 = vmatprep.subr.mxu0 0.0
    %88 = vmatpush1.msra.mxu0 %v64
    %89 = vmatprep.subr.mxu0 0.0
    %90 = vmatpush1.msra.mxu0 %v63
    %91 = vmatprep.subr.mxu0 0.0
    %92 = vmatpush1.msra.mxu0 %v62
    %93 = vmatprep.subr.mxu0 0.0
    %94 = vmatpush1.msra.mxu0 %v61
    %95 = vmatprep.subr.mxu0 0.0
    %96 = vmatpush1.msra.mxu0 %v60
    %97 = vmatprep.subr.mxu0 0.0
    %98 = vmatpush1.msra.mxu0 %v59
    %99 = vmatprep.subr.mxu0 0.0
    %100 = vmatpush1.msra.mxu0 %v58
    %101 = vmatprep.subr.mxu0 0.0
    %102 = vmatpush1.msra.mxu0 %v57
    %103 = vmatprep.subr.mxu0 0.0
    %104 = vmatpush1.msra.mxu0 %v56
    %105 = vmatprep.subr.mxu0 0.0
    %106 = vmatpush1.msra.mxu0 %v55
    %107 = vmatprep.subr.mxu0 0.0
    %108 = vmatpush1.msra.mxu0 %v54
    %109 = vmatprep.subr.mxu0 0.0
    %110 = vmatpush2.msra.mxu0 0.0
    %111 = vmatprep.subr.mxu0 0.0
    %112 = vmatpush2.msra.mxu0 0.0
    %113 = vmatprep.subr.mxu0 0.0
    %114 = vmatpush2.msra.mxu0 0.0
    %115 = vmatprep.subr.mxu0 0.0
    %116 = vmatpush2.msra.mxu0 0.0
    %117 = vmatprep.subr.mxu0 0.0
    %118 = vmatpush2.msra.mxu0 0.0
    %119 = vmatprep.subr.mxu0 0.0
    %120 = vmatpush2.msra.mxu0 0.0
    %121 = vmatprep.subr.mxu0 0.0
    %122 = vmatpush2.msra.mxu0 0.0
    %123 = vmatprep.subr.mxu0 0.0
    %124 = vmatpush2.msra.mxu0 0.0
    %125 = vmatprep.subr.mxu0 0.0
    %126 = vmatpush2.msra.mxu0 0.0
    %127 = vmatprep.subr.mxu0 0.0
    %128 = vmatpush2.msra.mxu0 0.0
    %129 = vmatprep.subr.mxu0 0.0
    %130 = vmatpush2.msra.mxu0 0.0
    %131 = vmatprep.subr.mxu0 0.0
    %132 = vmatpush2.msra.mxu0 0.0
    %133 = vmatprep.subr.mxu0 0.0
    %134 = vmatpush2.msra.mxu0 0.0
    %135 = vmatprep.subr.mxu0 0.0
    %136 = vmatpush2.msra.mxu0 0.0
    %137 = vmatprep.subr.mxu0 0.0
    %138 = vmatpush2.msra.mxu0 0.0
    %139 = vmatprep.subr.mxu0 0.0
    %140 = vmatpush2.msra.mxu0 0.0
    %141 = vmatprep.mubr.f32.mxu0 0.0
    %142 = vmatmul.mubr.f32.gmra.mxu0 %v53
    %v143 = vpop.f32.mrf.mxu0
    %v144 = vadd.f32 %v75, %v143
    %v145 = vpop.f32.mrf.mxu0
    %146 = vdwg.mxu0
    %v147 = vtanh.pop %v144
    %v148 = vld [vmem:[#allocation4] sm:$0xff]
    %v149 = vld [vmem:[#allocation4 + $0x8] sm:$0xff]
    %v150 = vld [vmem:[#allocation4 + $0x10] sm:$0xff]
    %v151 = vld [vmem:[#allocation4 + $0x18] sm:$0xff]
    %v152 = vld [vmem:[#allocation4 + $0x20] sm:$0xff]
    %v153 = vld [vmem:[#allocation4 + $0x28] sm:$0xff]
    %v154 = vld [vmem:[#allocation4 + $0x30] sm:$0xff]
    %v155 = vld [vmem:[#allocation4 + $0x38] sm:$0xff]
    %v156 = vld [vmem:[#allocation4 + $0x40] sm:$0xff]
    %v157 = vld [vmem:[#allocation4 + $0x48] sm:$0xff]
    %v158 = vld [vmem:[#allocation4 + $0x50] sm:$0xff]
    %v159 = vld [vmem:[#allocation4 + $0x58] sm:$0xff]
    %v160 = vld [vmem:[#allocation4 + $0x60] sm:$0xff]
    %v161 = vld [vmem:[#allocation4 + $0x68] sm:$0xff]
    %v162 = vld [vmem:[#allocation4 + $0x70] sm:$0xff]
    %v163 = vld [vmem:[#allocation4 + $0x78] sm:$0xff]
    %v164 = vld [vmem:[%s5] sm:$0x1]
    %v166 = vlaneseq
    %v167 = vshrl.u32 %v166, 7
    %v168 = vsub.s32 0, %v167
    %v169 = vrot.slane %v164, %v168
    %171 = vmatprep.subr.mxu0 0.0
    %172 = vmatpush1.msra.mxu0 %v163
    %173 = vmatprep.subr.mxu0 0.0
    %174 = vmatpush1.msra.mxu0 %v162
    %175 = vmatprep.subr.mxu0 0.0
    %176 = vmatpush1.msra.mxu0 %v161
    %177 = vmatprep.subr.mxu0 0.0
    %178 = vmatpush1.msra.mxu0 %v160
    %179 = vmatprep.subr.mxu0 0.0
    %180 = vmatpush1.msra.mxu0 %v159
    %181 = vmatprep.subr.mxu0 0.0
    %182 = vmatpush1.msra.mxu0 %v158
    %183 = vmatprep.subr.mxu0 0.0
    %184 = vmatpush1.msra.mxu0 %v157
    %185 = vmatprep.subr.mxu0 0.0
    %186 = vmatpush1.msra.mxu0 %v156
    %187 = vmatprep.subr.mxu0 0.0
    %188 = vmatpush1.msra.mxu0 %v155
    %189 = vmatprep.subr.mxu0 0.0
    %190 = vmatpush1.msra.mxu0 %v154
    %191 = vmatprep.subr.mxu0 0.0
    %192 = vmatpush1.msra.mxu0 %v153
    %193 = vmatprep.subr.mxu0 0.0
    %194 = vmatpush1.msra.mxu0 %v152
    %195 = vmatprep.subr.mxu0 0.0
    %196 = vmatpush1.msra.mxu0 %v151
    %197 = vmatprep.subr.mxu0 0.0
    %198 = vmatpush1.msra.mxu0 %v150
    %199 = vmatprep.subr.mxu0 0.0
    %200 = vmatpush1.msra.mxu0 %v149
    %201 = vmatprep.subr.mxu0 0.0
    %202 = vmatpush1.msra.mxu0 %v148
    %203 = vmatprep.subr.mxu0 0.0
    %204 = vmatpush2.msra.mxu0 0.0
    %205 = vmatprep.subr.mxu0 0.0
    %206 = vmatpush2.msra.mxu0 0.0
    %207 = vmatprep.subr.mxu0 0.0
    %208 = vmatpush2.msra.mxu0 0.0
    %209 = vmatprep.subr.mxu0 0.0
    %210 = vmatpush2.msra.mxu0 0.0
    %211 = vmatprep.subr.mxu0 0.0
    %212 = vmatpush2.msra.mxu0 0.0
    %213 = vmatprep.subr.mxu0 0.0
    %214 = vmatpush2.msra.mxu0 0.0
    %215 = vmatprep.subr.mxu0 0.0
    %216 = vmatpush2.msra.mxu0 0.0
    %217 = vmatprep.subr.mxu0 0.0
    %218 = vmatpush2.msra.mxu0 0.0
    %219 = vmatprep.subr.mxu0 0.0
    %220 = vmatpush2.msra.mxu0 0.0
    %221 = vmatprep.subr.mxu0 0.0
    %222 = vmatpush2.msra.mxu0 0.0
    %223 = vmatprep.subr.mxu0 0.0
    %224 = vmatpush2.msra.mxu0 0.0
    %225 = vmatprep.subr.mxu0 0.0
    %226 = vmatpush2.msra.mxu0 0.0
    %227 = vmatprep.subr.mxu0 0.0
    %228 = vmatpush2.msra.mxu0 0.0
    %229 = vmatprep.subr.mxu0 0.0
    %230 = vmatpush2.msra.mxu0 0.0
    %231 = vmatprep.subr.mxu0 0.0
    %232 = vmatpush2.msra.mxu0 0.0
    %233 = vmatprep.subr.mxu0 0.0
    %234 = vmatpush2.msra.mxu0 0.0
    %235 = vmatprep.mubr.f32.mxu0 0.0
    %236 = vmatmul.mubr.f32.gmra.mxu0 %v147
    %v237 = vpop.f32.mrf.mxu0
    %v238 = vadd.f32 %v169, %v237
    %v239 = vpop.f32.mrf.mxu0
    %240 = vdwg.mxu0
    %241 = vst [vmem:[%s6] sm:$0xff] %v238
    // Predicated region
    $region34: #{_lambda_.1} parent=1 // pred_check
      _
    $region35: #{_lambda_.1} parent=1 // pred_check_branch
      %243 = sbr.rel (0) target = $region37
    $region36: #{_lambda_.1} parent=1 // pred_region
      _
    $region37: #{_lambda_.1} parent=1 // pred_fallthru
      _
    // Predicated region
    $region38: #{_lambda_.1} parent=1 // pred_check
      _
    $region39: #{_lambda_.1} parent=1 // pred_check_branch
      %245 = sbr.rel (0) target = $region41
    $region40: #{_lambda_.1} parent=1 // pred_region
      _
    $region41: #{_lambda_.1} parent=1 // pred_fallthru
      _
    %246 = vsyncpa [#allocation3], 1
    %247 = vsyncpa [#allocation5], 1

</llo_original>
